<compile_context>
chip_gen: v6e
topology: v6e:2x2x1
jax: 0.10.0
libtpu: 0.0.40
codegen_flags: <defaults>
</compile_context>

<pallas_src>
import functools
import math

import jax
import jax.numpy as jnp
from jax.experimental import pallas as pl
from jax.experimental.pallas import tpu as pltpu

LANE = 128
ROW_PACK = 32          # batch-tile rows rounded to 32 (legal packing for bf16/int8)
NUM_TIMESTEPS = 100


def _round_up(x, m):
    return (x + m - 1) // m * m


def _cdiv(a, b):
    return -(-a // b)


def timestep_embedding(t, dim):
    """Sinusoidal timestep embedding, shape (B, dim). Plain-JAX glue (tiny)."""
    half = dim // 2
    freqs = jnp.exp(-math.log(10000.0) * jnp.arange(half, dtype=jnp.float32) / half)
    args = t.astype(jnp.float32)[:, None] * freqs[None, :]
    return jnp.concatenate([jnp.cos(args), jnp.sin(args)], axis=-1)


# -----------------------------------------------------------------------------
# Pallas kernel: XOR noising + fused denoise-MLP + BCE/accuracy row-reduction
# -----------------------------------------------------------------------------
def _make_kernel(b_real, d_real, needs_row_mask, needs_col_mask):
    def kernel(
        x_ref,       # (TB, Dp)   clean bits {0,1}, bf16
        m_ref,       # (TB, Dp)   Bernoulli flip mask {0,1}, bf16
        te_ref,      # (TB, T)    timestep embedding, bf16
        w1x_ref,     # (Dp, Hp)   bf16
        w1t_ref,     # (T,  Hp)   bf16
        b1_ref,      # (1,  Hp)   f32
        w2_ref,      # (Hp, Dp)   bf16
        b2_ref,      # (1,  Dp)   f32
        logits_ref,  # (TB, Dp)   out: denoised logits, f32
        loss_ref,    # (1, 1, Dp) out: per-tile per-lane BCE partial sums
        acc_ref,     # (1, 1, Dp) out: per-tile per-lane correct-bit counts
    ):
        tb, d_pad = x_ref.shape

        # ---- XOR noising on {0,1}-valued floats: x ^ m == x + m - 2*x*m ----
        x = x_ref[...].astype(jnp.float32)
        m = m_ref[...].astype(jnp.float32)
        x_noised = x + m - 2.0 * x * m

        # ---- denoise MLP: bf16 operands, f32 accumulation ----
        h = (jnp.dot(x_noised.astype(jnp.bfloat16), w1x_ref[...],
                     preferred_element_type=jnp.float32)
             + jnp.dot(te_ref[...], w1t_ref[...],
                       preferred_element_type=jnp.float32)
             + b1_ref[...])
        h = jnp.maximum(h, 0.0)
        logits = jnp.dot(h.astype(jnp.bfloat16), w2_ref[...],
                         preferred_element_type=jnp.float32) + b2_ref[...]
        logits_ref[...] = logits

        # ---- numerically-stable BCE-with-logits against the clean bits ----
        bce = (jnp.maximum(logits, 0.0) - logits * x
               + jnp.log(1.0 + jnp.exp(-jnp.abs(logits))))
        correct = ((logits > 0.0).astype(jnp.float32) == x).astype(jnp.float32)

        def reduce_rows(row_w):
            if row_w is None:
                lv = jnp.sum(bce, axis=0, keepdims=True)          # (1, Dp)
                av = jnp.sum(correct, axis=0, keepdims=True)
            else:
                lv = jnp.sum(bce * row_w, axis=0, keepdims=True)
                av = jnp.sum(correct * row_w, axis=0, keepdims=True)
            if needs_col_mask:
                cmask = (jax.lax.broadcasted_iota(jnp.int32, (1, d_pad), 1)
                         < d_real).astype(jnp.float32)
                lv = lv * cmask
                av = av * cmask
            return lv, av

        lv, av = reduce_rows(None)
        loss_ref[...] = lv.reshape(1, 1, d_pad)
        acc_ref[...] = av.reshape(1, 1, d_pad)

        if needs_row_mask:
            i = pl.program_id(0)

            @pl.when(i == pl.num_programs(0) - 1)
            def _():
                row = jax.lax.broadcasted_iota(jnp.int32, (tb, 1), 0) + i * tb
                row_w = (row < b_real).astype(jnp.float32)
                lv2, av2 = reduce_rows(row_w)
                loss_ref[...] = lv2.reshape(1, 1, d_pad)
                acc_ref[...] = av2.reshape(1, 1, d_pad)

    return kernel


# -----------------------------------------------------------------------------
# Wrapper: noising randomness / embedding / padding glue + pallas_call plumbing
# -----------------------------------------------------------------------------
@functools.partial(jax.jit, static_argnames=("batch_tile",))
def diffusion_forward(x, t, key, params, batch_tile=512):
    B, D = x.shape
    T = params["w1t"].shape[0]
    H = params["w1x"].shape[1]

    # Glue computed once in the wrapper (tiny vs. the x stream).
    t_emb = timestep_embedding(t, T).astype(jnp.bfloat16)                 # (B, T)
    flip_prob = (t.astype(jnp.float32) / NUM_TIMESTEPS * 0.5)[:, None]    # (B, 1)
    u = jax.random.uniform(key, (B, D), dtype=jnp.float32)
    mask = (u < flip_prob).astype(jnp.bfloat16)                           # (B, D) {0,1}

    # Tiling geometry: balanced batch tiles, lane-dense feature dims.
    n_chunks = max(1, _cdiv(B, batch_tile))
    TB = _round_up(_cdiv(B, n_chunks), ROW_PACK)
    B_pad = _round_up(B, TB)
    n_tiles = B_pad // TB
    D_pad = _round_up(D, LANE)
    H_pad = _round_up(H, LANE)

    x_p = jnp.pad(x.astype(jnp.bfloat16), ((0, B_pad - B), (0, D_pad - D)))
    m_p = jnp.pad(mask, ((0, B_pad - B), (0, D_pad - D)))
    te_p = jnp.pad(t_emb, ((0, B_pad - B), (0, 0)))

    w1x = jnp.pad(params["w1x"], ((0, D_pad - D), (0, H_pad - H))).astype(jnp.bfloat16)
    w1t = jnp.pad(params["w1t"], ((0, 0), (0, H_pad - H))).astype(jnp.bfloat16)
    b1 = jnp.pad(params["b1"].astype(jnp.float32), ((0, 0), (0, H_pad - H)))
    w2 = jnp.pad(params["w2"], ((0, H_pad - H), (0, D_pad - D))).astype(jnp.bfloat16)
    b2 = jnp.pad(params["b2"].astype(jnp.float32), ((0, 0), (0, D_pad - D)))

    kernel = _make_kernel(B, D, B_pad > B, D_pad > D)

    flops = 2 * B_pad * H_pad * (D_pad + T + D_pad)
    bytes_accessed = (2 * B_pad * (2 * D_pad + T)                 # x, mask, t_emb (bf16)
                      + 4 * B_pad * D_pad                         # logits out (f32)
                      + 2 * (D_pad * H_pad + T * H_pad + H_pad * D_pad)
                      + 4 * (H_pad + D_pad)
                      + 2 * 4 * n_tiles * D_pad)
    cost = pl.CostEstimate(flops=int(flops),
                           transcendentals=int(2 * B_pad * D_pad),
                           bytes_accessed=int(bytes_accessed))

    logits_pad, loss_parts, acc_parts = pl.pallas_call(
        kernel,
        out_shape=(
            jax.ShapeDtypeStruct((B_pad, D_pad), jnp.float32),
            jax.ShapeDtypeStruct((n_tiles, 1, D_pad), jnp.float32),
            jax.ShapeDtypeStruct((n_tiles, 1, D_pad), jnp.float32),
        ),
        grid=(n_tiles,),
        in_specs=[
            pl.BlockSpec((TB, D_pad), lambda i: (i, 0)),      # x (batch-tiled, bf16)
            pl.BlockSpec((TB, D_pad), lambda i: (i, 0)),      # flip mask (bf16)
            pl.BlockSpec((TB, T), lambda i: (i, 0)),          # t_emb (bf16, unpadded T)
            pl.BlockSpec((D_pad, H_pad), lambda i: (0, 0)),   # W1x (VMEM-resident)
            pl.BlockSpec((T, H_pad), lambda i: (0, 0)),       # W1t
            pl.BlockSpec((1, H_pad), lambda i: (0, 0)),       # b1
            pl.BlockSpec((H_pad, D_pad), lambda i: (0, 0)),   # W2
            pl.BlockSpec((1, D_pad), lambda i: (0, 0)),       # b2
        ],
        out_specs=(
            pl.BlockSpec((TB, D_pad), lambda i: (i, 0)),        # logits (lane-dense)
            pl.BlockSpec((1, 1, D_pad), lambda i: (i, 0, 0)),   # per-tile loss partials
            pl.BlockSpec((1, 1, D_pad), lambda i: (i, 0, 0)),   # per-tile correct counts
        ),
        compiler_params=pltpu.CompilerParams(
            dimension_semantics=("parallel",),
            vmem_limit_bytes=64 * 1024 * 1024,
        ),
        cost_estimate=cost,
    )(x_p, m_p, te_p, w1x, w1t, b1, w2, b2)

    denom = jnp.float32(B * D)
    loss = jnp.sum(loss_parts) / denom
    acc = jnp.sum(acc_parts) / denom
    logits = logits_pad[:B, :D]

    # Mirrors BaseDiffusion.forward's (tensor, Dict, Dict) return contract.
    return logits, {"loss": loss}, {"accuracy": acc}


# TODO(synk): BaseDiffusion.sample / from_config / config are abstract (no defined
# computation in the reference class); only the training forward path is kernelized.


if __name__ == "__main__":
    B, D, T, H = 8, 32, 16, 64

    key = jax.random.PRNGKey(0)
    k_x, k_t, k_noise, k_w1x, k_w1t, k_w2 = jax.random.split(key, 6)

    # Clean binary tabular rows and deterministic timesteps.
    x = jax.random.bernoulli(k_x, p=0.5, shape=(B, D)).astype(jnp.float32)
    t = jax.random.randint(k_t, (B,), 0, NUM_TIMESTEPS)

    # Deterministic synthetic denoise-model parameters.
    params = {
        "w1x": jax.random.normal(k_w1x, (D, H), jnp.float32) * (1.0 / math.sqrt(D)),
        "w1t": jax.random.normal(k_w1t, (T, H), jnp.float32) * (1.0 / math.sqrt(T)),
        "b1": jnp.zeros((1, H), jnp.float32),
        "w2": jax.random.normal(k_w2, (H, D), jnp.float32) * (1.0 / math.sqrt(H)),
        "b2": jnp.zeros((1, D), jnp.float32),
    }

    logits, loss_dict, acc_dict = diffusion_forward(x, t, k_noise, params)
    jax.block_until_ready(logits)
    loss = loss_dict["loss"]
    acc = acc_dict["accuracy"]
    jax.block_until_ready(loss)
    jax.block_until_ready(acc)

    assert logits.shape == (B, D)
    assert loss.shape == ()
    assert bool(jnp.isfinite(loss))
    assert 0.0 <= float(acc) <= 1.0

    print("KERNEL_OK")
</pallas_src>

<mosaic_0001>
module attributes {stable_mosaic.version = 11 : i64} {
  func.func @kernel(%arg0: i32, %arg1: memref<32x128xbf16, #tpu.memory_space<vmem>>, %arg2: memref<32x128xbf16, #tpu.memory_space<vmem>>, %arg3: memref<32x16xbf16, #tpu.memory_space<vmem>>, %arg4: memref<128x128xbf16, #tpu.memory_space<vmem>>, %arg5: memref<16x128xbf16, #tpu.memory_space<vmem>>, %arg6: memref<1x128xf32, #tpu.memory_space<vmem>>, %arg7: memref<128x128xbf16, #tpu.memory_space<vmem>>, %arg8: memref<1x128xf32, #tpu.memory_space<vmem>>, %arg9: memref<32x128xf32, #tpu.memory_space<vmem>>, %arg10: memref<1x1x128xf32, #tpu.memory_space<vmem>>, %arg11: memref<1x1x128xf32, #tpu.memory_space<vmem>>) attributes {dimension_semantics = [#tpu.dimension_semantics<parallel>], iteration_bounds = array<i64: 1>, scalar_prefetch = 0 : i64, scratch_operands = 0 : i64, tpu.core_type = #tpu.core_type<tc>, window_params = [{transform_indices = @transform_0, window_bounds = array<i64: 32, 128>}, {transform_indices = @transform_1, window_bounds = array<i64: 32, 128>}, {transform_indices = @transform_2, window_bounds = array<i64: 32, 16>}, {pipeline_mode = #tpu.pipeline_mode<synchronous>, transform_indices = @transform_3, window_bounds = array<i64: 128, 128>}, {pipeline_mode = #tpu.pipeline_mode<synchronous>, transform_indices = @transform_4, window_bounds = array<i64: 16, 128>}, {pipeline_mode = #tpu.pipeline_mode<synchronous>, transform_indices = @transform_5, window_bounds = array<i64: 1, 128>}, {pipeline_mode = #tpu.pipeline_mode<synchronous>, transform_indices = @transform_6, window_bounds = array<i64: 128, 128>}, {pipeline_mode = #tpu.pipeline_mode<synchronous>, transform_indices = @transform_7, window_bounds = array<i64: 1, 128>}, {transform_indices = @transform_8, window_bounds = array<i64: 32, 128>}, {transform_indices = @transform_9, window_bounds = array<i64: 1, 1, 128>}, {transform_indices = @transform_10, window_bounds = array<i64: 1, 1, 128>}]} {
    %c0 = arith.constant 0 : index
    %c0_0 = arith.constant 0 : index
    %0 = vector.load %arg1[%c0, %c0_0] : memref<32x128xbf16, #tpu.memory_space<vmem>>, vector<32x128xbf16>
    %1 = arith.extf %0 : vector<32x128xbf16> to vector<32x128xf32>
    %c0_1 = arith.constant 0 : index
    %c0_2 = arith.constant 0 : index
    %2 = vector.load %arg2[%c0_1, %c0_2] : memref<32x128xbf16, #tpu.memory_space<vmem>>, vector<32x128xbf16>
    %3 = arith.extf %2 : vector<32x128xbf16> to vector<32x128xf32>
    %4 = arith.addf %1, %3 : vector<32x128xf32>
    %cst = arith.constant 2.000000e+00 : f32
    %5 = vector.broadcast %cst : f32 to vector<32x128xf32>
    %6 = arith.mulf %5, %1 : vector<32x128xf32>
    %7 = arith.mulf %6, %3 : vector<32x128xf32>
    %8 = arith.subf %4, %7 : vector<32x128xf32>
    %9 = arith.truncf %8 : vector<32x128xf32> to vector<32x128xbf16>
    %c0_3 = arith.constant 0 : index
    %c0_4 = arith.constant 0 : index
    %10 = vector.load %arg4[%c0_3, %c0_4] : memref<128x128xbf16, #tpu.memory_space<vmem>>, vector<128x128xbf16>
    %cst_5 = arith.constant dense<0.000000e+00> : vector<32x128xf32>
    %11 = tpu.matmul %9, %10, %cst_5 {dimension_numbers = #tpu.dot_dimension_numbers<[1], [0], [0], [1], [0, 0, 1, 1], [], []>} : vector<32x128xbf16>, vector<128x128xbf16>, vector<32x128xf32> -> vector<32x128xf32>
    %c0_6 = arith.constant 0 : index
    %c0_7 = arith.constant 0 : index
    %12 = vector.load %arg3[%c0_6, %c0_7] : memref<32x16xbf16, #tpu.memory_space<vmem>>, vector<32x16xbf16>
    %c0_8 = arith.constant 0 : index
    %c0_9 = arith.constant 0 : index
    %13 = vector.load %arg5[%c0_8, %c0_9] : memref<16x128xbf16, #tpu.memory_space<vmem>>, vector<16x128xbf16>
    %cst_10 = arith.constant dense<0.000000e+00> : vector<32x128xf32>
    %14 = tpu.matmul %12, %13, %cst_10 {dimension_numbers = #tpu.dot_dimension_numbers<[1], [0], [0], [1], [0, 0, 1, 1], [], []>} : vector<32x16xbf16>, vector<16x128xbf16>, vector<32x128xf32> -> vector<32x128xf32>
    %15 = arith.addf %11, %14 : vector<32x128xf32>
    %c0_11 = arith.constant 0 : index
    %c0_12 = arith.constant 0 : index
    %16 = vector.load %arg6[%c0_11, %c0_12] : memref<1x128xf32, #tpu.memory_space<vmem>>, vector<1x128xf32>
    %17 = vector.broadcast %16 : vector<1x128xf32> to vector<32x128xf32>
    %18 = arith.addf %15, %17 : vector<32x128xf32>
    %cst_13 = arith.constant 0.000000e+00 : f32
    %19 = vector.broadcast %cst_13 : f32 to vector<32x128xf32>
    %20 = arith.maximumf %18, %19 : vector<32x128xf32>
    %21 = arith.truncf %20 : vector<32x128xf32> to vector<32x128xbf16>
    %c0_14 = arith.constant 0 : index
    %c0_15 = arith.constant 0 : index
    %22 = vector.load %arg7[%c0_14, %c0_15] : memref<128x128xbf16, #tpu.memory_space<vmem>>, vector<128x128xbf16>
    %cst_16 = arith.constant dense<0.000000e+00> : vector<32x128xf32>
    %23 = tpu.matmul %21, %22, %cst_16 {dimension_numbers = #tpu.dot_dimension_numbers<[1], [0], [0], [1], [0, 0, 1, 1], [], []>} : vector<32x128xbf16>, vector<128x128xbf16>, vector<32x128xf32> -> vector<32x128xf32>
    %c0_17 = arith.constant 0 : index
    %c0_18 = arith.constant 0 : index
    %24 = vector.load %arg8[%c0_17, %c0_18] : memref<1x128xf32, #tpu.memory_space<vmem>>, vector<1x128xf32>
    %25 = vector.broadcast %24 : vector<1x128xf32> to vector<32x128xf32>
    %26 = arith.addf %23, %25 : vector<32x128xf32>
    %c0_19 = arith.constant 0 : index
    %c0_20 = arith.constant 0 : index
    %27 = vector.load %arg9[%c0_19, %c0_20] : memref<32x128xf32, #tpu.memory_space<vmem>>, vector<32x128xf32>
    tpu.vector_store %arg9[%c0_19, %c0_20], %26 {strides = array<i32>} : memref<32x128xf32, #tpu.memory_space<vmem>>, vector<32x128xf32>,
    %cst_21 = arith.constant 0.000000e+00 : f32
    %28 = vector.broadcast %cst_21 : f32 to vector<32x128xf32>
    %29 = arith.maximumf %26, %28 : vector<32x128xf32>
    %30 = arith.mulf %26, %1 : vector<32x128xf32>
    %31 = arith.subf %29, %30 : vector<32x128xf32>
    %32 = math.absf %26 : vector<32x128xf32>
    %cst_22 = arith.constant 0.000000e+00 : f32
    %33 = vector.broadcast %cst_22 : f32 to vector<32x128xf32>
    %34 = arith.subf %33, %32 : vector<32x128xf32>
    %35 = math.exp %34 : vector<32x128xf32>
    %cst_23 = arith.constant 1.000000e+00 : f32
    %36 = vector.broadcast %cst_23 : f32 to vector<32x128xf32>
    %37 = arith.addf %36, %35 : vector<32x128xf32>
    %38 = math.log %37 : vector<32x128xf32>
    %39 = arith.addf %31, %38 : vector<32x128xf32>
    %cst_24 = arith.constant 0.000000e+00 : f32
    %40 = vector.broadcast %cst_24 : f32 to vector<32x128xf32>
    %41 = arith.cmpf ogt, %26, %40 : vector<32x128xf32>
    %42 = arith.extui %41 : vector<32x128xi1> to vector<32x128xi32>
    %43 = arith.sitofp %42 : vector<32x128xi32> to vector<32x128xf32>
    %44 = arith.cmpf oeq, %43, %1 : vector<32x128xf32>
    %45 = arith.extui %44 : vector<32x128xi1> to vector<32x128xi32>
    %46 = arith.sitofp %45 : vector<32x128xi32> to vector<32x128xf32>
    %cst_25 = arith.constant dense<0.000000e+00> : vector<128xf32>
    %47 = vector.multi_reduction <add>, %39, %cst_25 [0] : vector<32x128xf32> to vector<128xf32>
    %48 = vector.shape_cast %47 : vector<128xf32> to vector<1x128xf32>
    %cst_26 = arith.constant dense<0.000000e+00> : vector<128xf32>
    %49 = vector.multi_reduction <add>, %46, %cst_26 [0] : vector<32x128xf32> to vector<128xf32>
    %50 = vector.shape_cast %49 : vector<128xf32> to vector<1x128xf32>
    %51 = tpu.iota {dimensions = array<i32: 1>} : vector<1x128xi32>
    %c32_i32 = arith.constant 32 : i32
    %52 = vector.broadcast %c32_i32 : i32 to vector<1x128xi32>
    %53 = arith.cmpi slt, %51, %52 : vector<1x128xi32>
    %54 = arith.extui %53 : vector<1x128xi1> to vector<1x128xi32>
    %55 = arith.sitofp %54 : vector<1x128xi32> to vector<1x128xf32>
    %56 = arith.mulf %48, %55 : vector<1x128xf32>
    %57 = arith.mulf %50, %55 : vector<1x128xf32>
    %58 = vector.shape_cast %56 : vector<1x128xf32> to vector<1x1x128xf32>
    %c0_27 = arith.constant 0 : index
    %c0_28 = arith.constant 0 : index
    %c0_29 = arith.constant 0 : index
    %59 = vector.load %arg10[%c0_27, %c0_28, %c0_29] : memref<1x1x128xf32, #tpu.memory_space<vmem>>, vector<1x1x128xf32>
    tpu.vector_store %arg10[%c0_27, %c0_28, %c0_29], %58 {strides = array<i32>} : memref<1x1x128xf32, #tpu.memory_space<vmem>>, vector<1x1x128xf32>,
    %60 = vector.shape_cast %57 : vector<1x128xf32> to vector<1x1x128xf32>
    %c0_30 = arith.constant 0 : index
    %c0_31 = arith.constant 0 : index
    %c0_32 = arith.constant 0 : index
    %61 = vector.load %arg11[%c0_30, %c0_31, %c0_32] : memref<1x1x128xf32, #tpu.memory_space<vmem>>, vector<1x1x128xf32>
    tpu.vector_store %arg11[%c0_30, %c0_31, %c0_32], %60 {strides = array<i32>} : memref<1x1x128xf32, #tpu.memory_space<vmem>>, vector<1x1x128xf32>,
    %c0_i32 = arith.constant 0 : i32
    %62 = arith.cmpi eq, %arg0, %c0_i32 : i32
    %63 = arith.extui %62 : i1 to i32
    %c0_i32_33 = arith.constant 0 : i32
    %64 = arith.cmpi ne, %63, %c0_i32_33 : i32
    scf.if %64 {
      %65 = tpu.iota {dimensions = array<i32: 0>} : vector<32x1xi32>
      %c32_i32_34 = arith.constant 32 : i32
      %66 = arith.muli %arg0, %c32_i32_34 : i32
      %67 = vector.broadcast %66 : i32 to vector<32x1xi32>
      %68 = arith.addi %65, %67 : vector<32x1xi32>
      %c8_i32 = arith.constant 8 : i32
      %69 = vector.broadcast %c8_i32 : i32 to vector<32x1xi32>
      %70 = arith.cmpi slt, %68, %69 : vector<32x1xi32>
      %71 = arith.extui %70 : vector<32x1xi1> to vector<32x1xi32>
      %72 = arith.sitofp %71 : vector<32x1xi32> to vector<32x1xf32>
      %73 = vector.broadcast %72 : vector<32x1xf32> to vector<32x128xf32>
      %74 = arith.mulf %39, %73 : vector<32x128xf32>
      %cst_35 = arith.constant dense<0.000000e+00> : vector<128xf32>
      %75 = vector.multi_reduction <add>, %74, %cst_35 [0] : vector<32x128xf32> to vector<128xf32>
      %76 = vector.shape_cast %75 : vector<128xf32> to vector<1x128xf32>
      %77 = vector.broadcast %72 : vector<32x1xf32> to vector<32x128xf32>
      %78 = arith.mulf %46, %77 : vector<32x128xf32>
      %cst_36 = arith.constant dense<0.000000e+00> : vector<128xf32>
      %79 = vector.multi_reduction <add>, %78, %cst_36 [0] : vector<32x128xf32> to vector<128xf32>
      %80 = vector.shape_cast %79 : vector<128xf32> to vector<1x128xf32>
      %81 = tpu.iota {dimensions = array<i32: 1>} : vector<1x128xi32>
      %c32_i32_37 = arith.constant 32 : i32
      %82 = vector.broadcast %c32_i32_37 : i32 to vector<1x128xi32>
      %83 = arith.cmpi slt, %81, %82 : vector<1x128xi32>
      %84 = arith.extui %83 : vector<1x128xi1> to vector<1x128xi32>
      %85 = arith.sitofp %84 : vector<1x128xi32> to vector<1x128xf32>
      %86 = arith.mulf %76, %85 : vector<1x128xf32>
      %87 = arith.mulf %80, %85 : vector<1x128xf32>
      %88 = vector.shape_cast %86 : vector<1x128xf32> to vector<1x1x128xf32>
      %c0_38 = arith.constant 0 : index
      %c0_39 = arith.constant 0 : index
      %c0_40 = arith.constant 0 : index
      %89 = vector.load %arg10[%c0_38, %c0_39, %c0_40] : memref<1x1x128xf32, #tpu.memory_space<vmem>>, vector<1x1x128xf32>
      tpu.vector_store %arg10[%c0_38, %c0_39, %c0_40], %88 {strides = array<i32>} : memref<1x1x128xf32, #tpu.memory_space<vmem>>, vector<1x1x128xf32>,
      %90 = vector.shape_cast %87 : vector<1x128xf32> to vector<1x1x128xf32>
      %c0_41 = arith.constant 0 : index
      %c0_42 = arith.constant 0 : index
      %c0_43 = arith.constant 0 : index
      %91 = vector.load %arg11[%c0_41, %c0_42, %c0_43] : memref<1x1x128xf32, #tpu.memory_space<vmem>>, vector<1x1x128xf32>
      tpu.vector_store %arg11[%c0_41, %c0_42, %c0_43], %90 {strides = array<i32>} : memref<1x1x128xf32, #tpu.memory_space<vmem>>, vector<1x1x128xf32>,
    } else {
    }
    return
  }
  func.func @transform_0(%arg0: i32) -> (i32, i32) {
    %c0_i32 = arith.constant 0 : i32
    %c0_i32_0 = arith.constant 0 : i32
    return %arg0, %c0_i32 : i32, i32
  }
  func.func @transform_1(%arg0: i32) -> (i32, i32) {
    %c0_i32 = arith.constant 0 : i32
    %c0_i32_0 = arith.constant 0 : i32
    return %arg0, %c0_i32 : i32, i32
  }
  func.func @transform_2(%arg0: i32) -> (i32, i32) {
    %c0_i32 = arith.constant 0 : i32
    %c0_i32_0 = arith.constant 0 : i32
    return %arg0, %c0_i32 : i32, i32
  }
  func.func @transform_3(%arg0: i32) -> (i32, i32) {
    %c0_i32 = arith.constant 0 : i32
    %c0_i32_0 = arith.constant 0 : i32
    %c0_i32_1 = arith.constant 0 : i32
    return %c0_i32, %c0_i32_0 : i32, i32
  }
  func.func @transform_4(%arg0: i32) -> (i32, i32) {
    %c0_i32 = arith.constant 0 : i32
    %c0_i32_0 = arith.constant 0 : i32
    %c0_i32_1 = arith.constant 0 : i32
    return %c0_i32, %c0_i32_0 : i32, i32
  }
  func.func @transform_5(%arg0: i32) -> (i32, i32) {
    %c0_i32 = arith.constant 0 : i32
    %c0_i32_0 = arith.constant 0 : i32
    %c0_i32_1 = arith.constant 0 : i32
    return %c0_i32, %c0_i32_0 : i32, i32
  }
  func.func @transform_6(%arg0: i32) -> (i32, i32) {
    %c0_i32 = arith.constant 0 : i32
    %c0_i32_0 = arith.constant 0 : i32
    %c0_i32_1 = arith.constant 0 : i32
    return %c0_i32, %c0_i32_0 : i32, i32
  }
  func.func @transform_7(%arg0: i32) -> (i32, i32) {
    %c0_i32 = arith.constant 0 : i32
    %c0_i32_0 = arith.constant 0 : i32
    %c0_i32_1 = arith.constant 0 : i32
    return %c0_i32, %c0_i32_0 : i32, i32
  }
  func.func @transform_8(%arg0: i32) -> (i32, i32) {
    %c0_i32 = arith.constant 0 : i32
    %c0_i32_0 = arith.constant 0 : i32
    return %arg0, %c0_i32 : i32, i32
  }
  func.func @transform_9(%arg0: i32) -> (i32, i32, i32) {
    %c0_i32 = arith.constant 0 : i32
    %c0_i32_0 = arith.constant 0 : i32
    %c0_i32_1 = arith.constant 0 : i32
    return %arg0, %c0_i32, %c0_i32_0 : i32, i32, i32
  }
  func.func @transform_10(%arg0: i32) -> (i32, i32, i32) {
    %c0_i32 = arith.constant 0 : i32
    %c0_i32_0 = arith.constant 0 : i32
    %c0_i32_1 = arith.constant 0 : i32
    return %arg0, %c0_i32, %c0_i32_0 : i32, i32, i32
  }
}

</mosaic_0001>

<llo_original>
// kernel: diffusion_forward.1
$region0: #{diffusion_forward.1}
  #allocation0 [shape = 'u32[]', space=smem, size = 0x4, offset = 0x4, fixed_abs, tag = 'smem constant byte address 0x4 - core index']
  #allocation1 [shape = 'u32[144,128]{1,0:T(1,128)}', space=vmem, size = 0x12000, scoped, tag = 'internal scratch']
  %s0 = inlined_call_operand.vmem [shape: bf16[32,128], index: 0, kind: input, shape index: {}]
  %s1 = inlined_call_operand.vmem [shape: bf16[32,128], index: 1, kind: input, shape index: {}]
  %s2 = inlined_call_operand.vmem [shape: bf16[32,16], index: 2, kind: input, shape index: {}]
  %s3 = inlined_call_operand.vmem [shape: bf16[128,128], index: 3, kind: input, shape index: {}]
  %s4 = inlined_call_operand.vmem [shape: bf16[16,128], index: 4, kind: input, shape index: {}]
  %s5 = inlined_call_operand.vmem [shape: f32[1,128], index: 5, kind: input, shape index: {}]
  %s6 = inlined_call_operand.vmem [shape: bf16[128,128], index: 6, kind: input, shape index: {}]
  %s7 = inlined_call_operand.vmem [shape: f32[1,128], index: 7, kind: input, shape index: {}]
  %s8 = inlined_call_operand.vmem [shape: f32[32,128], index: 8, kind: output, shape index: {0}]
  %s9 = inlined_call_operand.vmem [shape: f32[1,1,128], index: 9, kind: output, shape index: {1}]
  %s10 = inlined_call_operand.vmem [shape: f32[1,1,128], index: 10, kind: output, shape index: {2}]
  %11 = xla_tuple %s8, %s9, %s10
  %s12 = sld [smem:[#allocation0]]
  $region62: #{diffusion_forward.1} parent=0
    _
  %s14 = ssub.s32 1, %s12
  %s15 = scalar_select 0, %s14, %s12
  // Predicated region
  $region2: #{diffusion_forward.1} parent=0 // pred_check
    _
  $region3: #{diffusion_forward.1} parent=0 // pred_check_branch
    %17 = sbr.rel (0) target = $region5
  $region4: #{diffusion_forward.1} parent=0 // pred_region
    _
  $region5: #{diffusion_forward.1} parent=0 // pred_fallthru
    _
  // Predicated region
  $region6: #{diffusion_forward.1} parent=0 // pred_check
    _
  $region7: #{diffusion_forward.1} parent=0 // pred_check_branch
    %19 = sbr.rel (0) target = $region9
  $region8: #{diffusion_forward.1} parent=0 // pred_region
    _
  $region9: #{diffusion_forward.1} parent=0 // pred_fallthru
    _
  // Predicated region
  $region10: #{diffusion_forward.1} parent=0 // pred_check
    _
  $region11: #{diffusion_forward.1} parent=0 // pred_check_branch
    %21 = sbr.rel (0) target = $region13
  $region12: #{diffusion_forward.1} parent=0 // pred_region
    _
  $region13: #{diffusion_forward.1} parent=0 // pred_fallthru
    _
  // Predicated region
  $region14: #{diffusion_forward.1} parent=0 // pred_check
    _
  $region15: #{diffusion_forward.1} parent=0 // pred_check_branch
    %23 = sbr.rel (0) target = $region17
  $region16: #{diffusion_forward.1} parent=0 // pred_region
    _
  $region17: #{diffusion_forward.1} parent=0 // pred_fallthru
    _
  // Predicated region
  $region18: #{diffusion_forward.1} parent=0 // pred_check
    _
  $region19: #{diffusion_forward.1} parent=0 // pred_check_branch
    %25 = sbr.rel (0) target = $region21
  $region20: #{diffusion_forward.1} parent=0 // pred_region
    _
  $region21: #{diffusion_forward.1} parent=0 // pred_fallthru
    _
  // Predicated region
  $region22: #{diffusion_forward.1} parent=0 // pred_check
    _
  $region23: #{diffusion_forward.1} parent=0 // pred_check_branch
    %27 = sbr.rel (0) target = $region25
  $region24: #{diffusion_forward.1} parent=0 // pred_region
    _
  $region25: #{diffusion_forward.1} parent=0 // pred_fallthru
    _
  // Predicated region
  $region26: #{diffusion_forward.1} parent=0 // pred_check
    _
  $region27: #{diffusion_forward.1} parent=0 // pred_check_branch
    %29 = sbr.rel (0) target = $region29
  $region28: #{diffusion_forward.1} parent=0 // pred_region
    _
  $region29: #{diffusion_forward.1} parent=0 // pred_fallthru
    _
  // Predicated region
  $region30: #{diffusion_forward.1} parent=0 // pred_check
    _
  $region31: #{diffusion_forward.1} parent=0 // pred_check_branch
    %31 = sbr.rel (0) target = $region33
  $region32: #{diffusion_forward.1} parent=0 // pred_region
    _
  $region33: #{diffusion_forward.1} parent=0 // pred_fallthru
    _
  %v33 = vld [vmem:[%s0] sm:$0xf]
  %v34 = vld [vmem:[%s0 + $0x4] sm:$0xf]
  %v35 = vld [vmem:[%s0 + $0x8] sm:$0xf]
  %v36 = vld [vmem:[%s0 + $0xc] sm:$0xf]
  %v37 = vunpack.c.l.bf16 %v33
  %v38 = vunpack.c.l.bf16 %v34
  %v39 = vunpack.c.l.bf16 %v35
  %v40 = vunpack.c.l.bf16 %v36
  %v41 = vld [vmem:[%s1] sm:$0xf]
  %v42 = vld [vmem:[%s1 + $0x4] sm:$0xf]
  %v43 = vld [vmem:[%s1 + $0x8] sm:$0xf]
  %v44 = vld [vmem:[%s1 + $0xc] sm:$0xf]
  %v45 = vunpack.c.l.bf16 %v41
  %v46 = vunpack.c.l.bf16 %v42
  %v47 = vunpack.c.l.bf16 %v43
  %v48 = vunpack.c.l.bf16 %v44
  %v49 = vadd.f32 %v37, %v45
  %v50 = vadd.f32 %v38, %v46
  %v51 = vadd.f32 %v39, %v47
  %v52 = vadd.f32 %v40, %v48
  %v53 = vmul.f32 %v37, 2.0
  %v54 = vmul.f32 %v38, 2.0
  %v55 = vmul.f32 %v39, 2.0
  %v56 = vmul.f32 %v40, 2.0
  %v57 = vmul.f32 %v53, %v45
  %v58 = vmul.f32 %v54, %v46
  %v59 = vmul.f32 %v55, %v47
  %v60 = vmul.f32 %v56, %v48
  %v61 = vsub.f32 %v49, %v57
  %v62 = vsub.f32 %v50, %v58
  %v63 = vsub.f32 %v51, %v59
  %v64 = vsub.f32 %v52, %v60
  %v65 = vpack.c.bf16 %v62, %v61
  %v66 = vpack.c.bf16 %v64, %v63
  %v67 = vld [vmem:[%s3] sm:$0xf]
  %v68 = vld [vmem:[%s3 + $0x4] sm:$0xf]
  %v69 = vld [vmem:[%s3 + $0x8] sm:$0xf]
  %v70 = vld [vmem:[%s3 + $0xc] sm:$0xf]
  %v71 = vld [vmem:[%s3 + $0x10] sm:$0xf]
  %v72 = vld [vmem:[%s3 + $0x14] sm:$0xf]
  %v73 = vld [vmem:[%s3 + $0x18] sm:$0xf]
  %v74 = vld [vmem:[%s3 + $0x1c] sm:$0xf]
  %v75 = vld [vmem:[%s3 + $0x20] sm:$0xf]
  %v76 = vld [vmem:[%s3 + $0x24] sm:$0xf]
  %v77 = vld [vmem:[%s3 + $0x28] sm:$0xf]
  %v78 = vld [vmem:[%s3 + $0x2c] sm:$0xf]
  %v79 = vld [vmem:[%s3 + $0x30] sm:$0xf]
  %v80 = vld [vmem:[%s3 + $0x34] sm:$0xf]
  %v81 = vld [vmem:[%s3 + $0x38] sm:$0xf]
  %v82 = vld [vmem:[%s3 + $0x3c] sm:$0xf]
  %v83 = vld [vmem:[%s2] sm:$0xf]
  %v84 = vld [vmem:[%s2 + $0x4] sm:$0xf]
  %v85 = vld [vmem:[%s2 + $0x8] sm:$0xf]
  %v86 = vld [vmem:[%s2 + $0xc] sm:$0xf]
  %v87 = vld [vmem:[%s4] sm:$0xf]
  %v88 = vld [vmem:[%s4 + $0x4] sm:$0xf]
  %v93 = vunpack.c.l.b16 %v83
  %v94 = vunpack.c.l.b16 %v84
  %v95 = vunpack.c.l.b16 %v85
  %v96 = vunpack.c.l.b16 %v86
  %v97 = vpack.c.b16 %v94, %v93
  %v98 = vpack.c.b16 %v96, %v95
  %v101 = vunpack.c.l.b16 %v87
  %v102 = vunpack.c.l.b16 %v88
  %v103 = vpack.c.b16 %v102, %v101
  %vm105 = vcmask 130048
  %v107 = vsel %vm105, %v97, 0
  %v110 = vsel %vm105, %v98, 0
  %112 = vmatprep.subr.bf16.mxu0 0
  %113 = vmatpush1.bf16.msra.mxu0 0
  %114 = vmatprep.subr.bf16.mxu0 0
  %115 = vmatpush1.bf16.msra.mxu0 0
  %116 = vmatprep.subr.bf16.mxu0 0
  %117 = vmatpush1.bf16.msra.mxu0 0
  %118 = vmatprep.subr.bf16.mxu0 0
  %119 = vmatpush1.bf16.msra.mxu0 0
  %120 = vmatprep.subr.bf16.mxu0 0
  %121 = vmatpush1.bf16.msra.mxu0 0
  %122 = vmatprep.subr.bf16.mxu0 0
  %123 = vmatpush1.bf16.msra.mxu0 0
  %124 = vmatprep.subr.bf16.mxu0 0
  %125 = vmatpush1.bf16.msra.mxu0 0
  %126 = vmatprep.subr.bf16.mxu0 0
  %127 = vmatpush1.bf16.msra.mxu0 %v103
  %128 = vmatprep.subr.bf16.mxu0 0
  %129 = vmatpush2.bf16.msra.mxu0 0
  %130 = vmatprep.subr.bf16.mxu0 0
  %131 = vmatpush2.bf16.msra.mxu0 0
  %132 = vmatprep.subr.bf16.mxu0 0
  %133 = vmatpush2.bf16.msra.mxu0 0
  %134 = vmatprep.subr.bf16.mxu0 0
  %135 = vmatpush2.bf16.msra.mxu0 0
  %136 = vmatprep.subr.bf16.mxu0 0
  %137 = vmatpush2.bf16.msra.mxu0 0
  %138 = vmatprep.subr.bf16.mxu0 0
  %139 = vmatpush2.bf16.msra.mxu0 0
  %140 = vmatprep.subr.bf16.mxu0 0
  %141 = vmatpush2.bf16.msra.mxu0 0
  %142 = vmatprep.subr.bf16.mxu0 0
  %143 = vmatpush2.bf16.msra.mxu0 0
  %144 = vmatprep.mubr.bf16.mxu0 0
  %145 = vmatmul.mubr.bf16.gmra.mxu0 %v107
  %v146 = vpop.f32.mrf.mxu0
  %v147 = vadd.f32 0.0, %v146
  %v148 = vpop.f32.mrf.mxu0
  %v149 = vpop.f32.mrf.mxu0
  %v150 = vadd.f32 0.0, %v149
  %v151 = vpop.f32.mrf.mxu0
  %152 = vmatprep.mubr.bf16.mxu0 0
  %153 = vmatmul.mubr.bf16.gmra.mxu0 %v110
  %v154 = vpop.f32.mrf.mxu0
  %v155 = vadd.f32 0.0, %v154
  %v156 = vpop.f32.mrf.mxu0
  %v157 = vpop.f32.mrf.mxu0
  %v158 = vadd.f32 0.0, %v157
  %v159 = vpop.f32.mrf.mxu0
  %160 = vdwg.mxu0
  %v177 = vunpack.c.l.b16 %v67
  %v178 = vunpack.c.l.b16 %v68
  %v179 = vunpack.c.l.b16 %v69
  %v180 = vunpack.c.l.b16 %v70
  %v181 = vunpack.c.l.b16 %v71
  %v182 = vunpack.c.l.b16 %v72
  %v183 = vunpack.c.l.b16 %v73
  %v184 = vunpack.c.l.b16 %v74
  %v185 = vunpack.c.l.b16 %v75
  %v186 = vunpack.c.l.b16 %v76
  %v187 = vunpack.c.l.b16 %v77
  %v188 = vunpack.c.l.b16 %v78
  %v189 = vunpack.c.l.b16 %v79
  %v190 = vunpack.c.l.b16 %v80
  %v191 = vunpack.c.l.b16 %v81
  %v192 = vunpack.c.l.b16 %v82
  %v193 = vpack.c.b16 %v178, %v177
  %v194 = vpack.c.b16 %v180, %v179
  %v195 = vpack.c.b16 %v182, %v181
  %v196 = vpack.c.b16 %v184, %v183
  %v197 = vpack.c.b16 %v186, %v185
  %v198 = vpack.c.b16 %v188, %v187
  %v199 = vpack.c.b16 %v190, %v189
  %v200 = vpack.c.b16 %v192, %v191
  %209 = vmatprep.subr.bf16.mxu0 0
  %210 = vmatpush1.bf16.msra.mxu0 %v200
  %211 = vmatprep.subr.bf16.mxu0 0
  %212 = vmatpush1.bf16.msra.mxu0 %v199
  %213 = vmatprep.subr.bf16.mxu0 0
  %214 = vmatpush1.bf16.msra.mxu0 %v198
  %215 = vmatprep.subr.bf16.mxu0 0
  %216 = vmatpush1.bf16.msra.mxu0 %v197
  %217 = vmatprep.subr.bf16.mxu0 0
  %218 = vmatpush1.bf16.msra.mxu0 %v196
  %219 = vmatprep.subr.bf16.mxu0 0
  %220 = vmatpush1.bf16.msra.mxu0 %v195
  %221 = vmatprep.subr.bf16.mxu0 0
  %222 = vmatpush1.bf16.msra.mxu0 %v194
  %223 = vmatprep.subr.bf16.mxu0 0
  %224 = vmatpush1.bf16.msra.mxu0 %v193
  %225 = vmatprep.subr.bf16.mxu0 0
  %226 = vmatpush2.bf16.msra.mxu0 0
  %227 = vmatprep.subr.bf16.mxu0 0
  %228 = vmatpush2.bf16.msra.mxu0 0
  %229 = vmatprep.subr.bf16.mxu0 0
  %230 = vmatpush2.bf16.msra.mxu0 0
  %231 = vmatprep.subr.bf16.mxu0 0
  %232 = vmatpush2.bf16.msra.mxu0 0
  %233 = vmatprep.subr.bf16.mxu0 0
  %234 = vmatpush2.bf16.msra.mxu0 0
  %235 = vmatprep.subr.bf16.mxu0 0
  %236 = vmatpush2.bf16.msra.mxu0 0
  %237 = vmatprep.subr.bf16.mxu0 0
  %238 = vmatpush2.bf16.msra.mxu0 0
  %239 = vmatprep.subr.bf16.mxu0 0
  %240 = vmatpush2.bf16.msra.mxu0 0
  %241 = vmatprep.mubr.bf16.mxu0 0
  %242 = vmatmul.mubr.bf16.gmra.mxu0 %v65
  %v243 = vpop.f32.mrf.mxu0
  %v244 = vadd.f32 %v147, %v243
  %v245 = vpop.f32.mrf.mxu0
  %v246 = vpop.f32.mrf.mxu0
  %v247 = vadd.f32 %v150, %v246
  %v248 = vpop.f32.mrf.mxu0
  %249 = vmatprep.mubr.bf16.mxu0 0
  %250 = vmatmul.mubr.bf16.gmra.mxu0 %v66
  %v251 = vpop.f32.mrf.mxu0
  %v252 = vadd.f32 %v155, %v251
  %v253 = vpop.f32.mrf.mxu0
  %v254 = vpop.f32.mrf.mxu0
  %v255 = vadd.f32 %v158, %v254
  %v256 = vpop.f32.mrf.mxu0
  %257 = vdwg.mxu0
  %v258 = vld [vmem:[%s5] sm:$0x1]
  %v260 = vlaneseq
  %v261 = vshrl.u32 %v260, 7
  %v262 = vsub.s32 0, %v261
  %v263 = vrot.slane %v258, %v262
  %v265 = vadd.f32 %v244, %v263
  %v266 = vadd.f32 %v247, %v263
  %v267 = vadd.f32 %v252, %v263
  %v268 = vadd.f32 %v255, %v263
  %v269 = vmax.f32 %v265, 0.0
  %v270 = vmax.f32 %v266, 0.0
  %v271 = vmax.f32 %v267, 0.0
  %v272 = vmax.f32 %v268, 0.0
  %v273 = vpack.c.bf16 %v270, %v269
  %v274 = vpack.c.bf16 %v272, %v271
  %v275 = vld [vmem:[%s6] sm:$0xf]
  %v276 = vld [vmem:[%s6 + $0x4] sm:$0xf]
  %v277 = vld [vmem:[%s6 + $0x8] sm:$0xf]
  %v278 = vld [vmem:[%s6 + $0xc] sm:$0xf]
  %v279 = vld [vmem:[%s6 + $0x10] sm:$0xf]
  %v280 = vld [vmem:[%s6 + $0x14] sm:$0xf]
  %v281 = vld [vmem:[%s6 + $0x18] sm:$0xf]
  %v282 = vld [vmem:[%s6 + $0x1c] sm:$0xf]
  %v283 = vld [vmem:[%s6 + $0x20] sm:$0xf]
  %v284 = vld [vmem:[%s6 + $0x24] sm:$0xf]
  %v285 = vld [vmem:[%s6 + $0x28] sm:$0xf]
  %v286 = vld [vmem:[%s6 + $0x2c] sm:$0xf]
  %v287 = vld [vmem:[%s6 + $0x30] sm:$0xf]
  %v288 = vld [vmem:[%s6 + $0x34] sm:$0xf]
  %v289 = vld [vmem:[%s6 + $0x38] sm:$0xf]
  %v290 = vld [vmem:[%s6 + $0x3c] sm:$0xf]
  %v291 = vld [vmem:[%s7] sm:$0x1]
  %v293 = vlaneseq
  %v294 = vshrl.u32 %v293, 7
  %v295 = vsub.s32 0, %v294
  %v296 = vrot.slane %v291, %v295
  %v314 = vunpack.c.l.b16 %v275
  %v315 = vunpack.c.l.b16 %v276
  %v316 = vunpack.c.l.b16 %v277
  %v317 = vunpack.c.l.b16 %v278
  %v318 = vunpack.c.l.b16 %v279
  %v319 = vunpack.c.l.b16 %v280
  %v320 = vunpack.c.l.b16 %v281
  %v321 = vunpack.c.l.b16 %v282
  %v322 = vunpack.c.l.b16 %v283
  %v323 = vunpack.c.l.b16 %v284
  %v324 = vunpack.c.l.b16 %v285
  %v325 = vunpack.c.l.b16 %v286
  %v326 = vunpack.c.l.b16 %v287
  %v327 = vunpack.c.l.b16 %v288
  %v328 = vunpack.c.l.b16 %v289
  %v329 = vunpack.c.l.b16 %v290
  %v330 = vpack.c.b16 %v315, %v314
  %v331 = vpack.c.b16 %v317, %v316
  %v332 = vpack.c.b16 %v319, %v318
  %v333 = vpack.c.b16 %v321, %v320
  %v334 = vpack.c.b16 %v323, %v322
  %v335 = vpack.c.b16 %v325, %v324
  %v336 = vpack.c.b16 %v327, %v326
  %v337 = vpack.c.b16 %v329, %v328
  %346 = vmatprep.subr.bf16.mxu0 0
  %347 = vmatpush1.bf16.msra.mxu0 %v337
  %348 = vmatprep.subr.bf16.mxu0 0
  %349 = vmatpush1.bf16.msra.mxu0 %v336
  %350 = vmatprep.subr.bf16.mxu0 0
  %351 = vmatpush1.bf16.msra.mxu0 %v335
  %352 = vmatprep.subr.bf16.mxu0 0
  %353 = vmatpush1.bf16.msra.mxu0 %v334
  %354 = vmatprep.subr.bf16.mxu0 0
  %355 = vmatpush1.bf16.msra.mxu0 %v333
  %356 = vmatprep.subr.bf16.mxu0 0
  %357 = vmatpush1.bf16.msra.mxu0 %v332
  %358 = vmatprep.subr.bf16.mxu0 0
  %359 = vmatpush1.bf16.msra.mxu0 %v331
  %360 = vmatprep.subr.bf16.mxu0 0
  %361 = vmatpush1.bf16.msra.mxu0 %v330
  %362 = vmatprep.subr.bf16.mxu0 0
  %363 = vmatpush2.bf16.msra.mxu0 0
  %364 = vmatprep.subr.bf16.mxu0 0
  %365 = vmatpush2.bf16.msra.mxu0 0
  %366 = vmatprep.subr.bf16.mxu0 0
  %367 = vmatpush2.bf16.msra.mxu0 0
  %368 = vmatprep.subr.bf16.mxu0 0
  %369 = vmatpush2.bf16.msra.mxu0 0
  %370 = vmatprep.subr.bf16.mxu0 0
  %371 = vmatpush2.bf16.msra.mxu0 0
  %372 = vmatprep.subr.bf16.mxu0 0
  %373 = vmatpush2.bf16.msra.mxu0 0
  %374 = vmatprep.subr.bf16.mxu0 0
  %375 = vmatpush2.bf16.msra.mxu0 0
  %376 = vmatprep.subr.bf16.mxu0 0
  %377 = vmatpush2.bf16.msra.mxu0 0
  %378 = vmatprep.mubr.bf16.mxu0 0
  %379 = vmatmul.mubr.bf16.gmra.mxu0 %v273
  %v380 = vpop.f32.mrf.mxu0
  %v381 = vadd.f32 %v296, %v380
  %v382 = vpop.f32.mrf.mxu0
  %v383 = vpop.f32.mrf.mxu0
  %v384 = vadd.f32 %v296, %v383
  %v385 = vpop.f32.mrf.mxu0
  %386 = vmatprep.mubr.bf16.mxu0 0
  %387 = vmatmul.mubr.bf16.gmra.mxu0 %v274
  %v388 = vpop.f32.mrf.mxu0
  %v389 = vadd.f32 %v296, %v388
  %v390 = vpop.f32.mrf.mxu0
  %v391 = vpop.f32.mrf.mxu0
  %v392 = vadd.f32 %v296, %v391
  %v393 = vpop.f32.mrf.mxu0
  %394 = vdwg.mxu0
  %395 = vst [vmem:[%s8] sm:$0xff] %v381
  %396 = vst [vmem:[%s8 + $0x8] sm:$0xff] %v384
  %397 = vst [vmem:[%s8 + $0x10] sm:$0xff] %v389
  %398 = vst [vmem:[%s8 + $0x18] sm:$0xff] %v392
  %v399 = vmax.f32 %v381, 0.0
  %v400 = vmax.f32 %v384, 0.0
  %v401 = vmax.f32 %v389, 0.0
  %v402 = vmax.f32 %v392, 0.0
  %v403 = vmul.f32 %v381, %v37
  %v404 = vmul.f32 %v384, %v38
  %v405 = vmul.f32 %v389, %v39
  %v406 = vmul.f32 %v392, %v40
  %v407 = vsub.f32 %v399, %v403
  %v408 = vsub.f32 %v400, %v404
  %v409 = vsub.f32 %v401, %v405
  %v410 = vsub.f32 %v402, %v406
  %v411 = vand.u32 2147483647, %v381
  %v412 = vand.u32 2147483647, %v384
  %v413 = vand.u32 2147483647, %v389
  %v414 = vand.u32 2147483647, %v392
  %v415 = vsub.f32 0.0, %v411
  %v416 = vsub.f32 0.0, %v412
  %v417 = vsub.f32 0.0, %v413
  %v418 = vsub.f32 0.0, %v414
  %v419 = vmul.f32 %v415, 1.442695
  %v420 = vpow.pop %v419
  %v421 = vmul.f32 %v416, 1.442695
  %v422 = vpow.pop %v421
  %v423 = vmul.f32 %v417, 1.442695
  %v424 = vpow.pop %v423
  %v425 = vmul.f32 %v418, 1.442695
  %v426 = vpow.pop %v425
  %v427 = vadd.f32 %v420, 1.0
  %v428 = vadd.f32 %v422, 1.0
  %v429 = vadd.f32 %v424, 1.0
  %v430 = vadd.f32 %v426, 1.0
  %v431 = vlog2.pop %v427
  %v432 = vmul.f32 %v431, 0.6931472
  %v433 = vlog2.pop %v428
  %v434 = vmul.f32 %v433, 0.6931472
  %v435 = vlog2.pop %v429
  %v436 = vmul.f32 %v435, 0.6931472
  %v437 = vlog2.pop %v430
  %v438 = vmul.f32 %v437, 0.6931472
  %v439 = vadd.f32 %v407, %v432
  %v440 = vadd.f32 %v408, %v434
  %v441 = vadd.f32 %v409, %v436
  %v442 = vadd.f32 %v410, %v438
  %vm443 = vcmp.gt.f32.partialorder %v381, 0.0
  %vm444 = vcmp.gt.f32.partialorder %v384, 0.0
  %vm445 = vcmp.gt.f32.partialorder %v389, 0.0
  %vm446 = vcmp.gt.f32.partialorder %v392, 0.0
  %v447 = vsel %vm443, 1, 0
  %v448 = vsel %vm444, 1, 0
  %v449 = vsel %vm445, 1, 0
  %v450 = vsel %vm446, 1, 0
  %v451 = vcvt.s32.f32 %v447
  %v452 = vcvt.s32.f32 %v448
  %v453 = vcvt.s32.f32 %v449
  %v454 = vcvt.s32.f32 %v450
  %vm455 = vcmp.eq.f32.partialorder %v451, %v37
  %vm456 = vcmp.eq.f32.partialorder %v452, %v38
  %vm457 = vcmp.eq.f32.partialorder %v453, %v39
  %vm458 = vcmp.eq.f32.partialorder %v454, %v40
  %v459 = vsel %vm455, 1, 0
  %v460 = vsel %vm456, 1, 0
  %v461 = vsel %vm457, 1, 0
  %v462 = vsel %vm458, 1, 0
  %v463 = vcvt.s32.f32 %v459
  %v464 = vcvt.s32.f32 %v460
  %v465 = vcvt.s32.f32 %v461
  %v466 = vcvt.s32.f32 %v462
  %v467 = vadd.f32 %v439, %v440
  %v468 = vadd.f32 %v467, %v441
  %v469 = vadd.f32 %v468, %v442
  %v470 = vrot.slane %v469, 4
  %v471 = vadd.f32 %v469, %v470
  %v472 = vrot.slane %v471, 2
  %v473 = vadd.f32 %v471, %v472
  %v474 = vrot.slane %v473, 1
  %v475 = vadd.f32 %v473, %v474
  %v476 = vadd.f32 %v463, %v464
  %v477 = vadd.f32 %v476, %v465
  %v478 = vadd.f32 %v477, %v466
  %v479 = vrot.slane %v478, 4
  %v480 = vadd.f32 %v478, %v479
  %v481 = vrot.slane %v480, 2
  %v482 = vadd.f32 %v480, %v481
  %v483 = vrot.slane %v482, 1
  %v484 = vadd.f32 %v482, %v483
  %v485 = vlaneseq
  %v486 = vand.u32 %v485, 127
  %vm487 = vcmp.lt.s32.totalorder %v486, 32
  %v488 = vsel %vm487, 1, 0
  %v489 = vcvt.s32.f32 %v488
  %v490 = vmul.f32 %v475, %v489
  %v491 = vmul.f32 %v484, %v489
  %492 = vst [vmem:[%s9] sm:$0x1] %v490
  %493 = vst [vmem:[%s10] sm:$0x1] %v491
  %p494 = scmp.eq.s32.totalorder 0, 0
  // Predicated region
  $region34: #{diffusion_forward.1} parent=0 // pred_check
    %p495 = pneg %p494
  $region35: #{diffusion_forward.1} parent=0 // pred_check_branch
    %497 = sbr.rel (%p495) target = $region37
  $region36: #{diffusion_forward.1} parent=0 // pred_region
    %v498 = vlaneseq
    %v499 = vshrl.u32 %v498, 7
    %v500 = vadd.s32 %v499, 8
    %v501 = vadd.s32 %v499, 16
    %v502 = vadd.s32 %v499, 24
    %s503 = smul.u32 0, 32
    %v504 = vstv %s503
    %v505 = vadd.s32 %v499, %v504
    %v506 = vadd.s32 %v500, %v504
    %v507 = vadd.s32 %v501, %v504
    %v508 = vadd.s32 %v502, %v504
    %vm509 = vcmp.lt.s32.totalorder %v505, 8
    %vm510 = vcmp.lt.s32.totalorder %v506, 8
    %vm511 = vcmp.lt.s32.totalorder %v507, 8
    %vm512 = vcmp.lt.s32.totalorder %v508, 8
    %v513 = vsel %vm509, 1, 0
    %v514 = vsel %vm510, 1, 0
    %v515 = vsel %vm511, 1, 0
    %v516 = vsel %vm512, 1, 0
    %v517 = vcvt.s32.f32 %v513
    %v518 = vcvt.s32.f32 %v514
    %v519 = vcvt.s32.f32 %v515
    %v520 = vcvt.s32.f32 %v516
    %v521 = vmul.f32 %v439, %v517
    %v522 = vmul.f32 %v440, %v518
    %v523 = vmul.f32 %v441, %v519
    %v524 = vmul.f32 %v442, %v520
    %v525 = vadd.f32 %v521, %v522
    %v526 = vadd.f32 %v525, %v523
    %v527 = vadd.f32 %v526, %v524
    %v528 = vrot.slane %v527, 4
    %v529 = vadd.f32 %v527, %v528
    %v530 = vrot.slane %v529, 2
    %v531 = vadd.f32 %v529, %v530
    %v532 = vrot.slane %v531, 1
    %v533 = vadd.f32 %v531, %v532
    %v534 = vmul.f32 %v463, %v517
    %v535 = vmul.f32 %v464, %v518
    %v536 = vmul.f32 %v465, %v519
    %v537 = vmul.f32 %v466, %v520
    %v538 = vadd.f32 %v534, %v535
    %v539 = vadd.f32 %v538, %v536
    %v540 = vadd.f32 %v539, %v537
    %v541 = vrot.slane %v540, 4
    %v542 = vadd.f32 %v540, %v541
    %v543 = vrot.slane %v542, 2
    %v544 = vadd.f32 %v542, %v543
    %v545 = vrot.slane %v544, 1
    %v546 = vadd.f32 %v544, %v545
    %v547 = vmul.f32 %v533, %v489
    %v548 = vmul.f32 %v546, %v489
    %549 = vst [vmem:[%s9] sm:$0x1] %v547
    %550 = vst [vmem:[%s10] sm:$0x1] %v548
  $region37: #{diffusion_forward.1} parent=0 // pred_fallthru
    _
  // Predicated region
  $region38: #{diffusion_forward.1} parent=0 // pred_check
    _
  $region39: #{diffusion_forward.1} parent=0 // pred_check_branch
    %552 = sbr.rel (0) target = $region41
  $region40: #{diffusion_forward.1} parent=0 // pred_region
    _
  $region41: #{diffusion_forward.1} parent=0 // pred_fallthru
    _
  // Predicated region
  $region42: #{diffusion_forward.1} parent=0 // pred_check
    _
  $region43: #{diffusion_forward.1} parent=0 // pred_check_branch
    %554 = sbr.rel (0) target = $region45
  $region44: #{diffusion_forward.1} parent=0 // pred_region
    _
  $region45: #{diffusion_forward.1} parent=0 // pred_fallthru
    _
  // Predicated region
  $region46: #{diffusion_forward.1} parent=0 // pred_check
    _
  $region47: #{diffusion_forward.1} parent=0 // pred_check_branch
    %556 = sbr.rel (0) target = $region49
  $region48: #{diffusion_forward.1} parent=0 // pred_region
    _
  $region49: #{diffusion_forward.1} parent=0 // pred_fallthru
    _
  // Predicated region
  $region50: #{diffusion_forward.1} parent=0 // pred_check
    _
  $region51: #{diffusion_forward.1} parent=0 // pred_check_branch
    %558 = sbr.rel (0) target = $region53
  $region52: #{diffusion_forward.1} parent=0 // pred_region
    _
  $region53: #{diffusion_forward.1} parent=0 // pred_fallthru
    _
  // Predicated region
  $region54: #{diffusion_forward.1} parent=0 // pred_check
    _
  $region55: #{diffusion_forward.1} parent=0 // pred_check_branch
    %560 = sbr.rel (0) target = $region57
  $region56: #{diffusion_forward.1} parent=0 // pred_region
    _
  $region57: #{diffusion_forward.1} parent=0 // pred_fallthru
    _
  // Predicated region
  $region58: #{diffusion_forward.1} parent=0 // pred_check
    _
  $region59: #{diffusion_forward.1} parent=0 // pred_check_branch
    %562 = sbr.rel (0) target = $region61
  $region60: #{diffusion_forward.1} parent=0 // pred_region
    _
  $region61: #{diffusion_forward.1} parent=0 // pred_fallthru
    _

</llo_original>
